<compile_context>
chip_gen: v5e
topology: v5e:2x2
jax: 0.10.0
libtpu: 0.0.40
codegen_flags: <defaults>
</compile_context>

<pallas_src>
import functools

import jax
import jax.numpy as jnp
from jax.experimental import pallas as pl
from jax.experimental.pallas import tpu as pltpu

MODEL_DIM = 128          # model_dim (multiple of 128 -> lane aligned)
MAX_ROW_TILE = 512       # rows per grid step; 512x128 f32 = 256 KiB per block,
                         # double-buffers comfortably even in v7x's 64 MiB VMEM
EPS = 1e-6
DROPOUT_P = 0.1


# ------------------------------ small helpers ----------------------------------
def _choose_row_tile(n: int, max_tile: int = MAX_ROW_TILE) -> int:
    """Largest row tile <= max_tile that evenly divides n.  Full-array blocks
    are always layout-legal, so n itself is the fallback for small inputs."""
    if n <= max_tile:
        return n
    for t in range(max_tile - max_tile % 8, 7, -8):   # sublane-aligned divisors
        if n % t == 0:
            return t
    return n  # TODO(synk): pad ragged row counts instead of one oversized block


def _keep_threshold(p: float):
    """uint32 threshold such that P(bits >= threshold) == 1 - p."""
    t = int(round(p * (1 << 32)))
    t = max(0, min(t, (1 << 32) - 1))   # clamp: avoid uint32 overflow at p ~ 1.0
    return jnp.uint32(t)


def _uniform_bits(tile_idx, shape, seed):
    """Counter-based uniform uint32 bits, one per element of `shape`.

    gid = global_row * D + col, so the stream does not change when the row-tile
    size is retuned.  murmur3-style finalizer: cheap VPU-only integer ops,
    portable to interpret mode (no TPU hardware-PRNG primitives)."""
    rows, cols = shape
    r = jax.lax.broadcasted_iota(jnp.int32, shape, 0).astype(jnp.uint32)
    c = jax.lax.broadcasted_iota(jnp.int32, shape, 1).astype(jnp.uint32)
    grow = tile_idx.astype(jnp.uint32) * jnp.uint32(rows) + r      # global row
    x = grow * jnp.uint32(cols) + c                                # global elem
    x = x ^ (seed.astype(jnp.uint32) * jnp.uint32(0x9E3779B9))
    x = (x ^ (x >> 16)) * jnp.uint32(0x85EBCA6B)
    x = (x ^ (x >> 13)) * jnp.uint32(0xC2B2AE35)
    return x ^ (x >> 16)


def _apply_dropout(y, tile_idx, seed, p):
    keep = _uniform_bits(tile_idx, y.shape, seed) >= _keep_threshold(p)
    # mask * scale multiply: no separately materialized zeros tensor
    return y * (keep.astype(y.dtype) * jnp.asarray(1.0 / (1.0 - p), y.dtype))


# ---------------- fused kernel: LN -> linear -> dropout -> residual ------------
def _fused_kernel(seed_ref, x_ref, gamma_ref, beta_ref, w_ref, b_ref, o_ref,
                  *, p, training):
    x = x_ref[...].astype(jnp.float32)                             # (T, D)
    mean = jnp.mean(x, axis=-1, keepdims=True)
    var = jnp.mean(jnp.square(x - mean), axis=-1, keepdims=True)   # biased (torch)
    ln = (x - mean) * jax.lax.rsqrt(var + EPS)
    ln = ln * gamma_ref[...].astype(jnp.float32) + beta_ref[...].astype(jnp.float32)
    # linear sublayer on the MXU; the LN / dropout VPU work hides underneath it
    y = jnp.dot(ln, w_ref[...].astype(jnp.float32),
                preferred_element_type=jnp.float32)
    y = y + b_ref[...].astype(jnp.float32)
    if training and p > 0.0:
        y = _apply_dropout(y, pl.program_id(0), seed_ref[0], p)
    o_ref[...] = (x + y).astype(o_ref.dtype)


def sublayer_connection_fused_linear(x, w, bias, gamma, beta, *, seed=0,
                                     p=DROPOUT_P, training=True):
    """x: [B, S, D].  Single-pass fused  x + dropout(linear(layernorm(x)))."""
    assert 0.0 <= p < 1.0, "dropout prob must be in [0, 1)"
    b, s, d = x.shape
    n = b * s
    t = _choose_row_tile(n)
    x2d = x.reshape(n, d)
    itemsize = x.dtype.itemsize
    kern = functools.partial(_fused_kernel, p=float(p), training=bool(training))
    out = pl.pallas_call(
        kern,
        out_shape=jax.ShapeDtypeStruct((n, d), x.dtype),
        grid=(n // t,),
        in_specs=[
            pl.BlockSpec(memory_space=pltpu.SMEM),           # seed scalar
            pl.BlockSpec((t, d), lambda i: (i, 0)),          # x rows
            pl.BlockSpec((1, d), lambda i: (0, 0)),          # gamma (VMEM resident)
            pl.BlockSpec((1, d), lambda i: (0, 0)),          # beta
            pl.BlockSpec((d, d), lambda i: (0, 0)),          # W
            pl.BlockSpec((1, d), lambda i: (0, 0)),          # bias
        ],
        out_specs=pl.BlockSpec((t, d), lambda i: (i, 0)),
        compiler_params=pltpu.CompilerParams(
            dimension_semantics=("parallel",)),              # row tiles independent
        cost_estimate=pl.CostEstimate(
            flops=2 * n * d * d + 16 * n * d,
            transcendentals=n,
            bytes_accessed=2 * n * d * itemsize + (d * d + 3 * d) * 4),
    )(jnp.asarray([seed], jnp.int32), x2d,
      gamma.reshape(1, d), beta.reshape(1, d), w, bias.reshape(1, d))
    return out.reshape(b, s, d)


# -------------------- generic path: LN kernel + residual-dropout ---------------
def _layernorm_kernel(x_ref, gamma_ref, beta_ref, o_ref):
    x = x_ref[...].astype(jnp.float32)
    mean = jnp.mean(x, axis=-1, keepdims=True)
    var = jnp.mean(jnp.square(x - mean), axis=-1, keepdims=True)
    y = (x - mean) * jax.lax.rsqrt(var + EPS)
    y = y * gamma_ref[...].astype(jnp.float32) + beta_ref[...].astype(jnp.float32)
    o_ref[...] = y.astype(o_ref.dtype)


def layernorm(x2d, gamma, beta):
    n, d = x2d.shape
    t = _choose_row_tile(n)
    itemsize = x2d.dtype.itemsize
    return pl.pallas_call(
        _layernorm_kernel,
        out_shape=jax.ShapeDtypeStruct((n, d), x2d.dtype),
        grid=(n // t,),
        in_specs=[
            pl.BlockSpec((t, d), lambda i: (i, 0)),
            pl.BlockSpec((1, d), lambda i: (0, 0)),
            pl.BlockSpec((1, d), lambda i: (0, 0)),
        ],
        out_specs=pl.BlockSpec((t, d), lambda i: (i, 0)),
        compiler_params=pltpu.CompilerParams(dimension_semantics=("parallel",)),
        cost_estimate=pl.CostEstimate(
            flops=8 * n * d, transcendentals=n,
            bytes_accessed=2 * n * d * itemsize + 2 * d * 4),
    )(x2d, gamma.reshape(1, d), beta.reshape(1, d))


def _residual_dropout_kernel(seed_ref, x_ref, y_ref, o_ref, *, p, training):
    x = x_ref[...].astype(jnp.float32)
    y = y_ref[...].astype(jnp.float32)
    if training and p > 0.0:
        y = _apply_dropout(y, pl.program_id(0), seed_ref[0], p)
    o_ref[...] = (x + y).astype(o_ref.dtype)


def residual_dropout(x2d, y2d, seed, *, p=DROPOUT_P, training=True):
    assert 0.0 <= p < 1.0, "dropout prob must be in [0, 1)"
    n, d = x2d.shape
    t = _choose_row_tile(n)
    itemsize = x2d.dtype.itemsize
    kern = functools.partial(_residual_dropout_kernel, p=float(p),
                             training=bool(training))
    return pl.pallas_call(
        kern,
        out_shape=jax.ShapeDtypeStruct((n, d), x2d.dtype),
        grid=(n // t,),
        in_specs=[
            pl.BlockSpec(memory_space=pltpu.SMEM),        # seed scalar
            pl.BlockSpec((t, d), lambda i: (i, 0)),       # x (residual)
            pl.BlockSpec((t, d), lambda i: (i, 0)),       # sublayer(ln(x))
        ],
        out_specs=pl.BlockSpec((t, d), lambda i: (i, 0)),
        compiler_params=pltpu.CompilerParams(dimension_semantics=("parallel",)),
        cost_estimate=pl.CostEstimate(
            flops=6 * n * d, transcendentals=0,
            bytes_accessed=3 * n * d * itemsize),
        # NOTE: input_output_aliases={1: 0} would save one HBM buffer when the
        # caller donates x; left off so x remains usable afterwards.
    )(jnp.asarray([seed], jnp.int32), x2d, y2d)


def sublayer_connection(x, sublayer, gamma, beta, *, seed=0, p=DROPOUT_P,
                        training=True):
    """Generic path: arbitrary `sublayer` callable runs as plain JAX between
    the LayerNorm kernel and the fused residual+dropout kernel."""
    b, s, d = x.shape
    x2d = x.reshape(b * s, d)
    ln = layernorm(x2d, gamma, beta)
    y = sublayer(ln.reshape(b, s, d)).reshape(b * s, d)
    out = residual_dropout(x2d, y, seed, p=p, training=training)
    return out.reshape(b, s, d)


# ------------------------------------ demo -------------------------------------
if __name__ == "__main__":
    key = jax.random.PRNGKey(0)
    kx, kw, kb, kg, kbe = jax.random.split(key, 5)

    B, S, D = 2, 8, MODEL_DIM
    x = jax.random.normal(kx, (B, S, D), dtype=jnp.float32)

    # LayerNorm affine params (non-trivial to exercise gamma/beta)
    gamma = 1.0 + 0.05 * jax.random.normal(kg, (D,), jnp.float32)
    beta = 0.05 * jax.random.normal(kbe, (D,), jnp.float32)

    # linear sublayer (the arbitrary callable in the original module)
    w = 0.05 * jax.random.normal(kw, (D, D), jnp.float32)
    bias = 0.05 * jax.random.normal(kb, (D,), jnp.float32)
    sublayer = lambda t: jnp.dot(t, w, precision=jax.lax.Precision.HIGHEST) + bias

    # pure-JAX reference (eval mode: dropout = identity)
    mean = jnp.mean(x, axis=-1, keepdims=True)
    var = jnp.mean((x - mean) ** 2, axis=-1, keepdims=True)
    ln_ref = (x - mean) * jax.lax.rsqrt(var + EPS) * gamma + beta
    y_ref = sublayer(ln_ref)
    ref_eval = x + y_ref

    # ---- eval mode ----
    out_fused = sublayer_connection_fused_linear(x, w, bias, gamma, beta,
                                                 training=False)
    out_generic = sublayer_connection(x, sublayer, gamma, beta, training=False)
    jax.block_until_ready((out_fused, out_generic))
    assert jnp.allclose(out_generic, ref_eval, atol=1e-4, rtol=1e-4), \
        "generic path mismatch vs reference"
    assert jnp.allclose(out_fused, ref_eval, atol=5e-3, rtol=5e-3), \
        "fused path mismatch vs reference"

    # ---- training mode ----
    # every output element must equal either x (dropped) or x + y/(1-p) (kept)
    p = DROPOUT_P
    kept_val = x + y_ref / (1.0 - p)
    out_fused_tr = sublayer_connection_fused_linear(x, w, bias, gamma, beta,
                                                    seed=1234, p=p, training=True)
    out_generic_tr = sublayer_connection(x, sublayer, gamma, beta,
                                         seed=1234, p=p, training=True)
    jax.block_until_ready((out_fused_tr, out_generic_tr))
    for out_t in (out_fused_tr, out_generic_tr):
        ok = (jnp.isclose(out_t, kept_val, atol=5e-3, rtol=5e-3)
              | jnp.isclose(out_t, x, atol=5e-3, rtol=5e-3))
        assert bool(jnp.all(ok)), "dropout output not in {x, x + y/(1-p)}"

    print("KERNEL_OK")
</pallas_src>

<mosaic_0001>
module attributes {stable_mosaic.version = 11 : i64} {
  func.func @_fused_kernel(%arg0: i32, %arg1: memref<1xi32, #tpu.memory_space<smem>>, %arg2: memref<16x128xf32, #tpu.memory_space<vmem>>, %arg3: memref<1x128xf32, #tpu.memory_space<vmem>>, %arg4: memref<1x128xf32, #tpu.memory_space<vmem>>, %arg5: memref<128x128xf32, #tpu.memory_space<vmem>>, %arg6: memref<1x128xf32, #tpu.memory_space<vmem>>, %arg7: memref<16x128xf32, #tpu.memory_space<vmem>>) attributes {dimension_semantics = [#tpu.dimension_semantics<parallel>], iteration_bounds = array<i64: 1>, scalar_prefetch = 0 : i64, scratch_operands = 0 : i64, tpu.core_type = #tpu.core_type<tc>, window_params = [{transform_indices = @transform_0, window_bounds = array<i64: 1>}, {transform_indices = @transform_1, window_bounds = array<i64: 16, 128>}, {pipeline_mode = #tpu.pipeline_mode<synchronous>, transform_indices = @transform_2, window_bounds = array<i64: 1, 128>}, {pipeline_mode = #tpu.pipeline_mode<synchronous>, transform_indices = @transform_3, window_bounds = array<i64: 1, 128>}, {pipeline_mode = #tpu.pipeline_mode<synchronous>, transform_indices = @transform_4, window_bounds = array<i64: 128, 128>}, {pipeline_mode = #tpu.pipeline_mode<synchronous>, transform_indices = @transform_5, window_bounds = array<i64: 1, 128>}, {transform_indices = @transform_6, window_bounds = array<i64: 16, 128>}]} {
    %c0 = arith.constant 0 : index
    %c0_0 = arith.constant 0 : index
    %0 = vector.load %arg2[%c0, %c0_0] : memref<16x128xf32, #tpu.memory_space<vmem>>, vector<16x128xf32>
    %cst = arith.constant dense<0.000000e+00> : vector<16xf32>
    %1 = vector.multi_reduction <add>, %0, %cst [1] : vector<16x128xf32> to vector<16xf32>
    %2 = vector.shape_cast %1 : vector<16xf32> to vector<16x1xf32>
    %cst_1 = arith.constant 1.280000e+02 : f32
    %3 = vector.broadcast %cst_1 : f32 to vector<16x1xf32>
    %4 = arith.divf %2, %3 : vector<16x1xf32>
    %5 = vector.broadcast %4 : vector<16x1xf32> to vector<16x128xf32>
    %6 = arith.subf %0, %5 : vector<16x128xf32>
    %7 = arith.mulf %6, %6 : vector<16x128xf32>
    %cst_2 = arith.constant dense<0.000000e+00> : vector<16xf32>
    %8 = vector.multi_reduction <add>, %7, %cst_2 [1] : vector<16x128xf32> to vector<16xf32>
    %9 = vector.shape_cast %8 : vector<16xf32> to vector<16x1xf32>
    %cst_3 = arith.constant 1.280000e+02 : f32
    %10 = vector.broadcast %cst_3 : f32 to vector<16x1xf32>
    %11 = arith.divf %9, %10 : vector<16x1xf32>
    %12 = vector.broadcast %4 : vector<16x1xf32> to vector<16x128xf32>
    %13 = arith.subf %0, %12 : vector<16x128xf32>
    %cst_4 = arith.constant 9.99999997E-7 : f32
    %14 = vector.broadcast %cst_4 : f32 to vector<16x1xf32>
    %15 = arith.addf %11, %14 : vector<16x1xf32>
    %16 = math.rsqrt %15 : vector<16x1xf32>
    %17 = vector.broadcast %16 : vector<16x1xf32> to vector<16x128xf32>
    %18 = arith.mulf %13, %17 : vector<16x128xf32>
    %c0_5 = arith.constant 0 : index
    %c0_6 = arith.constant 0 : index
    %19 = vector.load %arg3[%c0_5, %c0_6] : memref<1x128xf32, #tpu.memory_space<vmem>>, vector<1x128xf32>
    %20 = vector.broadcast %19 : vector<1x128xf32> to vector<16x128xf32>
    %21 = arith.mulf %18, %20 : vector<16x128xf32>
    %c0_7 = arith.constant 0 : index
    %c0_8 = arith.constant 0 : index
    %22 = vector.load %arg4[%c0_7, %c0_8] : memref<1x128xf32, #tpu.memory_space<vmem>>, vector<1x128xf32>
    %23 = vector.broadcast %22 : vector<1x128xf32> to vector<16x128xf32>
    %24 = arith.addf %21, %23 : vector<16x128xf32>
    %c0_9 = arith.constant 0 : index
    %c0_10 = arith.constant 0 : index
    %25 = vector.load %arg5[%c0_9, %c0_10] : memref<128x128xf32, #tpu.memory_space<vmem>>, vector<128x128xf32>
    %cst_11 = arith.constant dense<0.000000e+00> : vector<16x128xf32>
    %26 = tpu.matmul %24, %25, %cst_11 {dimension_numbers = #tpu.dot_dimension_numbers<[1], [0], [0], [1], [0, 0, 1, 1], [], []>} : vector<16x128xf32>, vector<128x128xf32>, vector<16x128xf32> -> vector<16x128xf32>
    %c0_12 = arith.constant 0 : index
    %c0_13 = arith.constant 0 : index
    %27 = vector.load %arg6[%c0_12, %c0_13] : memref<1x128xf32, #tpu.memory_space<vmem>>, vector<1x128xf32>
    %28 = vector.broadcast %27 : vector<1x128xf32> to vector<16x128xf32>
    %29 = arith.addf %26, %28 : vector<16x128xf32>
    %30 = arith.addf %0, %29 : vector<16x128xf32>
    %c0_14 = arith.constant 0 : index
    %c0_15 = arith.constant 0 : index
    %31 = vector.load %arg7[%c0_14, %c0_15] : memref<16x128xf32, #tpu.memory_space<vmem>>, vector<16x128xf32>
    tpu.vector_store %arg7[%c0_14, %c0_15], %30 {strides = array<i32>} : memref<16x128xf32, #tpu.memory_space<vmem>>, vector<16x128xf32>,
    return
  }
  func.func @transform_0(%arg0: i32) -> i32 {
    %c0_i32 = arith.constant 0 : i32
    %c0_i32_0 = arith.constant 0 : i32
    return %c0_i32 : i32
  }
  func.func @transform_1(%arg0: i32) -> (i32, i32) {
    %c0_i32 = arith.constant 0 : i32
    %c0_i32_0 = arith.constant 0 : i32
    return %arg0, %c0_i32 : i32, i32
  }
  func.func @transform_2(%arg0: i32) -> (i32, i32) {
    %c0_i32 = arith.constant 0 : i32
    %c0_i32_0 = arith.constant 0 : i32
    %c0_i32_1 = arith.constant 0 : i32
    return %c0_i32, %c0_i32_0 : i32, i32
  }
  func.func @transform_3(%arg0: i32) -> (i32, i32) {
    %c0_i32 = arith.constant 0 : i32
    %c0_i32_0 = arith.constant 0 : i32
    %c0_i32_1 = arith.constant 0 : i32
    return %c0_i32, %c0_i32_0 : i32, i32
  }
  func.func @transform_4(%arg0: i32) -> (i32, i32) {
    %c0_i32 = arith.constant 0 : i32
    %c0_i32_0 = arith.constant 0 : i32
    %c0_i32_1 = arith.constant 0 : i32
    return %c0_i32, %c0_i32_0 : i32, i32
  }
  func.func @transform_5(%arg0: i32) -> (i32, i32) {
    %c0_i32 = arith.constant 0 : i32
    %c0_i32_0 = arith.constant 0 : i32
    %c0_i32_1 = arith.constant 0 : i32
    return %c0_i32, %c0_i32_0 : i32, i32
  }
  func.func @transform_6(%arg0: i32) -> (i32, i32) {
    %c0_i32 = arith.constant 0 : i32
    %c0_i32_0 = arith.constant 0 : i32
    return %arg0, %c0_i32 : i32, i32
  }
}

</mosaic_0001>

<llo_original>
// kernel: tpu_custom_call.1
$region0: #{tpu_custom_call.1}
  #allocation0 [shape = 'u32[]', space=smem, size = 0x4, offset = 0x4, fixed_abs, tag = 'smem constant byte address 0x4 - core index']
  #allocation1 [shape = 'u32[72,128]{1,0:T(1,128)}', space=vmem, size = 0x9000, scoped, tag = 'internal scratch']
  #allocation2 [shape = 's32[1]{0:T(128)S(6)}', space=smem, size = 0x200, scoped, tag = 'scoped memory for tpu_custom_call.1']
  %s0 = inlined_call_operand.<no memory space> [shape: s32[1], index: 0, kind: input, shape index: {}]
  %s1 = inlined_call_operand.hbm [shape: f32[16,128], index: 1, kind: input, shape index: {}]
  %s2 = inlined_call_operand.vmem [shape: f32[1,128], index: 2, kind: input, shape index: {}]
  %s3 = inlined_call_operand.vmem [shape: f32[1,128], index: 3, kind: input, shape index: {}]
  %s4 = inlined_call_operand.hbm [shape: f32[128,128], index: 4, kind: input, shape index: {}]
  %s5 = inlined_call_operand.vmem [shape: f32[1,128], index: 5, kind: input, shape index: {}]
  %s6 = inlined_call_operand.hbm [shape: f32[16,128], index: 6, kind: output, shape index: {}]
  %s7 = sld [smem:[#allocation0]]
  $region42: #{tpu_custom_call.1} parent=0
    _
  %s9 = ssub.s32 1, %s7
  %s10 = scalar_select 0, %s9, %s7
  %11 = sst [smem:[#allocation2]] %s0
  $region1: #{tpu_custom_call.1} parent=0
    #allocation3 [shape = 'u8[8192]{0}', space=vmem, size = 0x2000, scoped, tag = 'input window, operand 1, single buffered']
    #allocation4 [shape = 's32[1]{0}', space=sflag, size = 0x4, scoped, tag = 'scoped memory for tpu_custom_call.1']
    #allocation5 [shape = 's32[1]{0}', space=sflag, size = 0x4, scoped, tag = 'scoped memory for tpu_custom_call.1']
    #allocation6 [shape = 'u8[65536]{0}', space=vmem, size = 0x10000, scoped, tag = 'input window, operand 4, single buffered']
    #allocation7 [shape = 's32[1]{0}', space=sflag, size = 0x4, scoped, tag = 'scoped memory for tpu_custom_call.1']
    #allocation8 [shape = 'u8[8192]{0}', space=vmem, size = 0x2000, scoped, tag = 'output window, operand 0, single buffered']
    %12 = vsyncpa [#allocation4], 0
    %13 = vsyncpa [#allocation7], 0
    %14 = vsyncpa [#allocation5], 0
    // Predicated region
    $region2: #{tpu_custom_call.1} parent=1 // pred_check
      _
    $region3: #{tpu_custom_call.1} parent=1 // pred_check_branch
      %16 = sbr.rel (0) target = $region5
    $region4: #{tpu_custom_call.1} parent=1 // pred_region
      _
    $region5: #{tpu_custom_call.1} parent=1 // pred_fallthru
      _
    // Predicated region
    $region6: #{tpu_custom_call.1} parent=1 // pred_check
      _
    $region7: #{tpu_custom_call.1} parent=1 // pred_check_branch
      %18 = sbr.rel (0) target = $region9
    $region8: #{tpu_custom_call.1} parent=1 // pred_region
      %20 = vsyncadd [#allocation4], 0
      %s21 = sshll.u32 %s1, 4
      %s22 = int_to_ptr.hbm [resolvable:$true] %s21
      %s23 = sshll.u32 [#allocation3], 4
      %s24 = int_to_ptr.vmem [resolvable:$true] %s23
      %29 = dma.hbm_to_vmem [thread:$0]  %s22, 256, %s24, [#allocation4], 128, 128, 8
    $region9: #{tpu_custom_call.1} parent=1 // pred_fallthru
      _
    // Predicated region
    $region10: #{tpu_custom_call.1} parent=1 // pred_check
      _
    $region11: #{tpu_custom_call.1} parent=1 // pred_check_branch
      %31 = sbr.rel (0) target = $region13
    $region12: #{tpu_custom_call.1} parent=1 // pred_region
      _
    $region13: #{tpu_custom_call.1} parent=1 // pred_fallthru
      _
    // Predicated region
    $region14: #{tpu_custom_call.1} parent=1 // pred_check
      _
    $region15: #{tpu_custom_call.1} parent=1 // pred_check_branch
      %33 = sbr.rel (0) target = $region17
    $region16: #{tpu_custom_call.1} parent=1 // pred_region
      _
    $region17: #{tpu_custom_call.1} parent=1 // pred_fallthru
      _
    // Predicated region
    $region18: #{tpu_custom_call.1} parent=1 // pred_check
      _
    $region19: #{tpu_custom_call.1} parent=1 // pred_check_branch
      %35 = sbr.rel (0) target = $region21
    $region20: #{tpu_custom_call.1} parent=1 // pred_region
      %37 = vsyncadd [#allocation7], 0
      %s38 = sshll.u32 %s4, 4
      %s39 = int_to_ptr.hbm [resolvable:$true] %s38
      %s40 = sshll.u32 [#allocation6], 4
      %s41 = int_to_ptr.vmem [resolvable:$true] %s40
      %46 = dma.hbm_to_vmem [thread:$0]  %s39, 2048, %s41, [#allocation7], 128, 128, 8
    $region21: #{tpu_custom_call.1} parent=1 // pred_fallthru
      _
    // Predicated region
    $region22: #{tpu_custom_call.1} parent=1 // pred_check
      _
    $region23: #{tpu_custom_call.1} parent=1 // pred_check_branch
      %48 = sbr.rel (0) target = $region25
    $region24: #{tpu_custom_call.1} parent=1 // pred_region
      _
    $region25: #{tpu_custom_call.1} parent=1 // pred_fallthru
      _
    // Predicated region
    $region26: #{tpu_custom_call.1} parent=1 // pred_check
      _
    $region27: #{tpu_custom_call.1} parent=1 // pred_check_branch
      %50 = sbr.rel (0) target = $region29
    $region28: #{tpu_custom_call.1} parent=1 // pred_region
      %52 = dma.done [#allocation4], 256
    $region29: #{tpu_custom_call.1} parent=1 // pred_fallthru
      _
    // Predicated region
    $region30: #{tpu_custom_call.1} parent=1 // pred_check
      _
    $region31: #{tpu_custom_call.1} parent=1 // pred_check_branch
      %54 = sbr.rel (0) target = $region33
    $region32: #{tpu_custom_call.1} parent=1 // pred_region
      %56 = dma.done [#allocation7], 2048
    $region33: #{tpu_custom_call.1} parent=1 // pred_fallthru
      _
    %v57 = vld [vmem:[#allocation3] sm:$0xff]
    %v58 = vld [vmem:[#allocation3 + $0x8] sm:$0xff]
    %59 = vadd.xlane.f32.xlu0 %v57
    %v60 = vpop.xlane.xlu0 %59
    %61 = vadd.xlane.f32.xlu0 %v58
    %v62 = vpop.xlane.xlu0 %61
    %v63 = vrcp.pop 128.0
    %v64 = vmul.f32 128.0, %v63
    %v65 = vsub.f32 1.0, %v64
    %v66 = vmul.f32 %v63, %v65
    %v67 = vadd.f32 %v63, %v66
    %vm68 = vweird.f32 %v63
    %v69 = vsel %vm68, %v63, %v67
    %v70 = vmul.f32 %v60, %v69
    %v71 = vmul.f32 %v62, %v69
    %v72 = vsub.f32 %v57, %v70
    %v73 = vsub.f32 %v58, %v71
    %v74 = vmul.f32 %v72, %v72
    %v75 = vmul.f32 %v73, %v73
    %76 = vadd.xlane.f32.xlu0 %v74
    %v77 = vpop.xlane.xlu0 %76
    %78 = vadd.xlane.f32.xlu0 %v75
    %v79 = vpop.xlane.xlu0 %78
    %v80 = vmul.f32 %v77, %v69
    %v81 = vmul.f32 %v79, %v69
    %v82 = vadd.f32 %v80, 1e-06
    %v83 = vadd.f32 %v81, 1e-06
    %v84 = vrsqrt.pop %v82
    %v85 = vmul.f32 %v84, %v82
    %v86 = vmul.f32 %v85, %v84
    %v87 = vmul.f32 0.5, %v86
    %v88 = vsub.f32 1.5, %v87
    %v89 = vmul.f32 %v84, %v88
    %vm90 = vweird.f32 %v82
    %vm91 = vweird.f32 %v84
    %vm92 = vmor %vm90, %vm91
    %v93 = vsel %vm92, %v84, %v89
    %v94 = vrsqrt.pop %v83
    %v95 = vmul.f32 %v94, %v83
    %v96 = vmul.f32 %v95, %v94
    %v97 = vmul.f32 0.5, %v96
    %v98 = vsub.f32 1.5, %v97
    %v99 = vmul.f32 %v94, %v98
    %vm100 = vweird.f32 %v83
    %vm101 = vweird.f32 %v94
    %vm102 = vmor %vm100, %vm101
    %v103 = vsel %vm102, %v94, %v99
    %v104 = vmul.f32 %v72, %v93
    %v105 = vmul.f32 %v73, %v103
    %v106 = vld [vmem:[%s2] sm:$0x1]
    %v108 = vperm.slane %v106, 0
    %v110 = vmul.f32 %v104, %v108
    %v111 = vmul.f32 %v105, %v108
    %v112 = vld [vmem:[%s3] sm:$0x1]
    %v114 = vperm.slane %v112, 0
    %v116 = vadd.f32 %v110, %v114
    %v117 = vadd.f32 %v111, %v114
    %v118 = vld [vmem:[#allocation6] sm:$0xff]
    %v119 = vld [vmem:[#allocation6 + $0x8] sm:$0xff]
    %v120 = vld [vmem:[#allocation6 + $0x10] sm:$0xff]
    %v121 = vld [vmem:[#allocation6 + $0x18] sm:$0xff]
    %v122 = vld [vmem:[#allocation6 + $0x20] sm:$0xff]
    %v123 = vld [vmem:[#allocation6 + $0x28] sm:$0xff]
    %v124 = vld [vmem:[#allocation6 + $0x30] sm:$0xff]
    %v125 = vld [vmem:[#allocation6 + $0x38] sm:$0xff]
    %v126 = vld [vmem:[#allocation6 + $0x40] sm:$0xff]
    %v127 = vld [vmem:[#allocation6 + $0x48] sm:$0xff]
    %v128 = vld [vmem:[#allocation6 + $0x50] sm:$0xff]
    %v129 = vld [vmem:[#allocation6 + $0x58] sm:$0xff]
    %v130 = vld [vmem:[#allocation6 + $0x60] sm:$0xff]
    %v131 = vld [vmem:[#allocation6 + $0x68] sm:$0xff]
    %v132 = vld [vmem:[#allocation6 + $0x70] sm:$0xff]
    %v133 = vld [vmem:[#allocation6 + $0x78] sm:$0xff]
    %v134 = vld [vmem:[%s5] sm:$0x1]
    %v136 = vperm.slane %v134, 0
    %138 = vmatpush.msra.mxu0 %v133
    %139 = vmatpush.msra.mxu0 %v132
    %140 = vmatpush.msra.mxu0 %v131
    %141 = vmatpush.msra.mxu0 %v130
    %142 = vmatpush.msra.mxu0 %v129
    %143 = vmatpush.msra.mxu0 %v128
    %144 = vmatpush.msra.mxu0 %v127
    %145 = vmatpush.msra.mxu0 %v126
    %146 = vmatpush.msra.mxu0 %v125
    %147 = vmatpush.msra.mxu0 %v124
    %148 = vmatpush.msra.mxu0 %v123
    %149 = vmatpush.msra.mxu0 %v122
    %150 = vmatpush.msra.mxu0 %v121
    %151 = vmatpush.msra.mxu0 %v120
    %152 = vmatpush.msra.mxu0 %v119
    %153 = vmatpush.msra.mxu0 %v118
    %154 = vmatmul.f32.gmra.mxu0 %v116
    %v155 = vpop.f32.mrf.mxu0
    %v156 = vadd.f32 %v136, %v155
    %157 = vmatmul.f32.gmra.mxu0 %v117
    %v158 = vpop.f32.mrf.mxu0
    %v159 = vadd.f32 %v136, %v158
    %160 = vdwg.mxu0
    %v161 = vadd.f32 %v57, %v156
    %v162 = vadd.f32 %v58, %v159
    %163 = vst [vmem:[#allocation8] sm:$0xff] %v161
    %164 = vst [vmem:[#allocation8 + $0x8] sm:$0xff] %v162
    // Predicated region
    $region34: #{tpu_custom_call.1} parent=1 // pred_check
      _
    $region35: #{tpu_custom_call.1} parent=1 // pred_check_branch
      %166 = sbr.rel (0) target = $region37
    $region36: #{tpu_custom_call.1} parent=1 // pred_region
      %168 = vsyncadd [#allocation5], 0
      %s169 = sshll.u32 [#allocation8], 4
      %s170 = int_to_ptr.vmem [resolvable:$true] %s169
      %s171 = sshll.u32 %s6, 4
      %s172 = int_to_ptr.hbm [resolvable:$true] %s171
      %177 = dma.vmem_to_hbm [thread:$0]  %s170, 256, %s172, [#allocation5], 128, 128, 8
    $region37: #{tpu_custom_call.1} parent=1 // pred_fallthru
      _
    // Predicated region
    $region38: #{tpu_custom_call.1} parent=1 // pred_check
      _
    $region39: #{tpu_custom_call.1} parent=1 // pred_check_branch
      %179 = sbr.rel (0) target = $region41
    $region40: #{tpu_custom_call.1} parent=1 // pred_region
      %181 = dma.done [#allocation5], 256
    $region41: #{tpu_custom_call.1} parent=1 // pred_fallthru
      _
    %182 = vsyncpa [#allocation4], 1
    %183 = vsyncpa [#allocation7], 1
    %184 = vsyncpa [#allocation5], 1

</llo_original>
